<compile_context>
chip_gen: v5e
topology: v5e:2x2
jax: 0.10.0
libtpu: 0.0.40
codegen_flags: <defaults>
</compile_context>

<pallas_src>
import functools

import jax
import jax.numpy as jnp
from jax.experimental import pallas as pl
from jax.experimental.pallas import tpu as pltpu


def _fused_loss_kernel(x_ref, tcol_ref, trow_ref, z_ref, zp_ref, mb_ref, out_ref,
                       *, smoothing, temperature, weights, kernel_mul, kernel_num):
    f32 = jnp.float32

    # ------------- label-smoothing cross entropy (stacked logits) -------------
    B, C = x_ref.shape
    n_main = trow_ref.shape[1]                       # rows [0, n_main) = main logits
    x = x_ref[...].astype(f32) * (1.0 / temperature)                 # (B, C)
    cls = jax.lax.broadcasted_iota(jnp.int32, (B, C), 1)
    onehot = (cls == tcol_ref[...]).astype(f32)                      # (B, C)

    m = jnp.max(x, axis=-1, keepdims=True)
    lse = m + jnp.log(jnp.sum(jnp.exp(x - m), axis=-1, keepdims=True))
    logp = x - lse                                                   # log_softmax
    nll = -jnp.sum(logp * onehot, axis=-1, keepdims=True)            # (B, 1)
    smooth = -jnp.mean(logp, axis=-1, keepdims=True)                 # (B, 1)
    per_row = (1.0 - smoothing) * nll + smoothing * smooth           # (B, 1)

    lsce_main = jnp.sum(per_row[:n_main], keepdims=True) * (1.0 / n_main)        # (1,1)
    lsce_person = jnp.sum(per_row[n_main:], keepdims=True) * (1.0 / (B - n_main))

    # --------------- InfoGCN MMD: per-class mean of z vs z_prior --------------
    N, D = z_ref.shape
    K = zp_ref.shape[0]
    z = z_ref[...].astype(f32)                                       # (N, D)
    zp = zp_ref[...].astype(f32)                                     # (K, D)
    kcls = jax.lax.broadcasted_iota(jnp.int32, (K, N), 0)
    onehot_kn = (kcls == trow_ref[...]).astype(f32)                  # (K, N)
    counts = jnp.sum(onehot_kn, axis=-1, keepdims=True)              # (K, 1)
    # (K,N)x(N,D) MXU matmul; <1%-utilized but pure latency in this fused,
    # launch-bound kernel (simpler than an unrolled VPU accumulate).
    z_sum = jnp.dot(onehot_kn, z, preferred_element_type=f32)        # (K, D)
    valid = counts > 0.0
    z_mean = z_sum / jnp.maximum(counts, 1.0)
    diff = jnp.where(valid, z_mean - zp, 0.0)
    n_valid = jnp.maximum(jnp.sum(valid.astype(f32), keepdims=True), 1.0)
    info_mmd = jnp.sum(diff * diff, keepdims=True) / (n_valid * float(D))  # (1,1)

    z_bar = jnp.mean(z, axis=0, keepdims=True)                       # (1, D)
    l2_z_mean = jnp.sqrt(jnp.sum(z_bar * z_bar, keepdims=True))      # (1,1)

    # ------------------ RBF-kernel MMD between feature sets -------------------
    T2, _Cf = mb_ref.shape                                           # T2 = 2 * bs
    bs = T2 // 2
    tot = mb_ref[...].astype(f32)                                    # (T2, Cf)
    gram = jax.lax.dot_general(tot, tot, (((1,), (1,)), ((), ())),
                               preferred_element_type=f32)           # (T2, T2)
    sq_col = jnp.sum(tot * tot, axis=-1, keepdims=True)              # (T2, 1) = diag
    ridx = jax.lax.broadcasted_iota(jnp.int32, (T2, T2), 0)
    cidx = jax.lax.broadcasted_iota(jnp.int32, (T2, T2), 1)
    eye = (ridx == cidx).astype(f32)
    # Row-broadcast of the diagonal without an XLU transpose of sq_col.
    sq_row = jnp.sum(gram * eye, axis=0, keepdims=True)              # (1, T2)
    l2d = jnp.maximum(sq_col + sq_row - 2.0 * gram, 0.0)             # ||xi - xj||^2

    bw = (jnp.sum(l2d, keepdims=True)
          * (1.0 / float(T2 * T2 - T2))
          * (1.0 / (kernel_mul ** (kernel_num // 2))))               # (1,1)
    neg_scaled = l2d * (-pl.reciprocal(bw, approx=False))            # -L2 / bandwidth
    kernels = jnp.zeros_like(l2d)
    for i in range(kernel_num):                                      # EUP exp passes
        kernels = kernels + jnp.exp(neg_scaled * (kernel_mul ** (-float(i))))
    sgn = jnp.where(ridx < bs, 1.0, -1.0) * jnp.where(cidx < bs, 1.0, -1.0)
    mb_mmd = jnp.sum(sgn * kernels, keepdims=True) * (1.0 / float(bs * bs))  # (1,1)
    # (sgn-weighted sum == XX + YY - XY - YX quadrant means)

    # ----------------------------- weighted total -----------------------------
    total = (weights[0] * (lsce_main + lsce_person)
             + weights[1] * info_mmd
             + weights[2] * l2_z_mean
             + weights[3] * mb_mmd)                                  # (1,1)
    out_ref[0, 0] = total[0, 0]                                      # SMEM scalar store


def infogcn_loss_mbmmd_group(x_tuple, target, target_person, z_prior,
                             weights=(1.0, 0.1, 0.0001, 0.1),
                             smoothing=0.1, temperature=1.0,
                             kernel_mul=2.0, kernel_num=5):
    logits = x_tuple[0]            # (N, C)       classification logits
    z = x_tuple[1]                 # (N, D)       latent
    person_logits = x_tuple[2]     # (Np, Mp, Cp) per-person logits
    mb_tgt = x_tuple[-1]           # (Nf, Mf, Cf) MMD target features
    mb_src = x_tuple[-2]           # (Nf, Mf, Cf) MMD source features

    Np, Mp, Cp = person_logits.shape
    Nf, Mf, Cf = mb_tgt.shape
    N = logits.shape[0]

    # Cheap wrapper-side layout plumbing (a few KB total): stack the two CE
    # operands so the kernel runs one log-softmax pass, stack the two MMD
    # feature sets, and pack the labels (kept int32; no float casts here).
    x_all = jnp.concatenate([logits, person_logits.reshape(Np * Mp, Cp)], axis=0)
    t_col = jnp.concatenate(
        [target.reshape(-1).astype(jnp.int32),
         target_person.reshape(-1).astype(jnp.int32)], axis=0).reshape(-1, 1)
    t_row = target.reshape(1, N).astype(jnp.int32)
    mb_total = jnp.concatenate([mb_src.reshape(Nf * Mf, Cf),
                                mb_tgt.reshape(Nf * Mf, Cf)], axis=0)

    kernel = functools.partial(
        _fused_loss_kernel,
        smoothing=float(smoothing), temperature=float(temperature),
        weights=tuple(float(w) for w in weights),
        kernel_mul=float(kernel_mul), kernel_num=int(kernel_num))

    out = pl.pallas_call(
        kernel,
        out_shape=jax.ShapeDtypeStruct((1, 1), jnp.float32),
        in_specs=[pl.BlockSpec(memory_space=pltpu.MemorySpace.VMEM)
                  for _ in range(6)],
        out_specs=pl.BlockSpec(memory_space=pltpu.MemorySpace.SMEM),
    )(x_all, t_col, t_row, z, z_prior, mb_total)
    return out[0, 0]


def _reference_loss(x_tuple, target, target_person, z_prior,
                    weights=(1.0, 0.1, 0.0001, 0.1),
                    smoothing=0.1, temperature=1.0,
                    kernel_mul=2.0, kernel_num=5):
    """Pure-JAX reference mirroring the PyTorch module (for validation only)."""
    hi = jax.lax.Precision.HIGHEST
    logits, z, person_logits, mb_src, mb_tgt = x_tuple

    def lsce(x, t):
        logp = jax.nn.log_softmax(x / temperature, axis=-1)
        nll = -jnp.take_along_axis(logp, t[:, None], axis=-1)[:, 0]
        smooth = -jnp.mean(logp, axis=-1)
        return jnp.mean((1.0 - smoothing) * nll + smoothing * smooth)

    Np, Mp, Cp = person_logits.shape
    ce = lsce(logits, target) + lsce(person_logits.reshape(Np * Mp, Cp),
                                     target_person.reshape(-1))

    K, D = z_prior.shape
    onehot = (target[None, :] == jnp.arange(K)[:, None]).astype(jnp.float32)
    counts = onehot.sum(-1, keepdims=True)
    z_mean = jnp.dot(onehot, z, precision=hi) / jnp.maximum(counts, 1.0)
    valid = counts[:, 0] > 0
    diff = jnp.where(valid[:, None], z_mean - z_prior, 0.0)
    info_mmd = jnp.sum(diff * diff) / (jnp.sum(valid).astype(jnp.float32) * D)
    l2_z = jnp.linalg.norm(jnp.mean(z, axis=0))

    Nf, Mf, Cf = mb_tgt.shape
    src = mb_src.reshape(Nf * Mf, Cf)
    tgt = mb_tgt.reshape(Nf * Mf, Cf)
    tot = jnp.concatenate([src, tgt], 0)
    d2 = jnp.sum((tot[None, :, :] - tot[:, None, :]) ** 2, -1)
    T2 = tot.shape[0]
    bw = jnp.sum(d2) / (T2 * T2 - T2) / (kernel_mul ** (kernel_num // 2))
    kern = sum(jnp.exp(-d2 / (bw * kernel_mul ** i)) for i in range(kernel_num))
    bs = Nf * Mf
    mmd = (jnp.mean(kern[:bs, :bs]) + jnp.mean(kern[bs:, bs:])
           - jnp.mean(kern[:bs, bs:]) - jnp.mean(kern[bs:, :bs]))

    return (weights[0] * ce + weights[1] * info_mmd
            + weights[2] * l2_z + weights[3] * mmd)


if __name__ == "__main__":
    key = jax.random.PRNGKey(0)
    k_prior, k_logits, k_z, k_pl, k_s, k_t, k_y, k_yp = jax.random.split(key, 8)

    class_num = 26       # module defaults
    out_channels = 256
    feat_dim = 64        # MBMMD feature width
    N, M = 8, 2          # batch, persons per sample

    # z_prior: orthogonal init with gain=3 (deterministic via PRNGKey)
    z_prior = jax.nn.initializers.orthogonal(scale=3.0)(
        k_prior, (class_num, out_channels), jnp.float32)

    logits = jax.random.normal(k_logits, (N, class_num), jnp.float32)
    z = jax.random.normal(k_z, (N, out_channels), jnp.float32)
    person_logits = jax.random.normal(k_pl, (N, M, class_num), jnp.float32)
    mb_src = jax.random.normal(k_s, (N, M, feat_dim), jnp.float32)
    mb_tgt = mb_src + 0.1 * jax.random.normal(k_t, (N, M, feat_dim), jnp.float32)
    target = jax.random.randint(k_y, (N,), 0, class_num, jnp.int32)
    target_person = jax.random.randint(k_yp, (N, M), 0, class_num, jnp.int32)

    x_tuple = (logits, z, person_logits, mb_src, mb_tgt)

    loss = infogcn_loss_mbmmd_group(x_tuple, target, target_person, z_prior)
    jax.block_until_ready(loss)
    assert jnp.isfinite(loss)

    ref = _reference_loss(x_tuple, target, target_person, z_prior)
    jax.block_until_ready(ref)
    assert jnp.allclose(loss, ref, rtol=2e-3, atol=2e-3), (float(loss), float(ref))

    print("KERNEL_OK")
</pallas_src>

<mosaic_0001>
module attributes {stable_mosaic.version = 11 : i64} {
  func.func @_fused_loss_kernel(%arg0: memref<24x26xf32, #tpu.memory_space<vmem>>, %arg1: memref<24x1xi32, #tpu.memory_space<vmem>>, %arg2: memref<1x8xi32, #tpu.memory_space<vmem>>, %arg3: memref<8x256xf32, #tpu.memory_space<vmem>>, %arg4: memref<26x256xf32, #tpu.memory_space<vmem>>, %arg5: memref<32x64xf32, #tpu.memory_space<vmem>>, %arg6: memref<1x1xf32, #tpu.memory_space<smem>>) attributes {dimension_semantics = [], scalar_prefetch = 0 : i64, scratch_operands = 0 : i64, tpu.core_type = #tpu.core_type<tc>} {
    %c0 = arith.constant 0 : index
    %c0_0 = arith.constant 0 : index
    %0 = vector.load %arg0[%c0, %c0_0] : memref<24x26xf32, #tpu.memory_space<vmem>>, vector<24x26xf32>
    %cst = arith.constant 1.000000e+00 : f32
    %1 = vector.broadcast %cst : f32 to vector<24x26xf32>
    %2 = arith.mulf %0, %1 : vector<24x26xf32>
    %3 = tpu.iota {dimensions = array<i32: 1>} : vector<24x26xi32>
    %c0_1 = arith.constant 0 : index
    %c0_2 = arith.constant 0 : index
    %4 = vector.load %arg1[%c0_1, %c0_2] : memref<24x1xi32, #tpu.memory_space<vmem>>, vector<24x1xi32>
    %5 = vector.broadcast %4 : vector<24x1xi32> to vector<24x26xi32>
    %6 = arith.cmpi eq, %3, %5 : vector<24x26xi32>
    %7 = arith.extui %6 : vector<24x26xi1> to vector<24x26xi32>
    %8 = arith.sitofp %7 : vector<24x26xi32> to vector<24x26xf32>
    %cst_3 = arith.constant dense<0xFF800000> : vector<24xf32>
    %9 = vector.multi_reduction <maximumf>, %2, %cst_3 [1] : vector<24x26xf32> to vector<24xf32>
    %10 = vector.shape_cast %9 : vector<24xf32> to vector<24x1xf32>
    %11 = vector.broadcast %10 : vector<24x1xf32> to vector<24x26xf32>
    %12 = arith.subf %2, %11 : vector<24x26xf32>
    %13 = math.exp %12 : vector<24x26xf32>
    %cst_4 = arith.constant dense<0.000000e+00> : vector<24xf32>
    %14 = vector.multi_reduction <add>, %13, %cst_4 [1] : vector<24x26xf32> to vector<24xf32>
    %15 = vector.shape_cast %14 : vector<24xf32> to vector<24x1xf32>
    %16 = math.log %15 : vector<24x1xf32>
    %17 = arith.addf %10, %16 : vector<24x1xf32>
    %18 = vector.broadcast %17 : vector<24x1xf32> to vector<24x26xf32>
    %19 = arith.subf %2, %18 : vector<24x26xf32>
    %20 = arith.mulf %19, %8 : vector<24x26xf32>
    %cst_5 = arith.constant dense<0.000000e+00> : vector<24xf32>
    %21 = vector.multi_reduction <add>, %20, %cst_5 [1] : vector<24x26xf32> to vector<24xf32>
    %22 = vector.shape_cast %21 : vector<24xf32> to vector<24x1xf32>
    %cst_6 = arith.constant 0.000000e+00 : f32
    %23 = vector.broadcast %cst_6 : f32 to vector<24x1xf32>
    %24 = arith.subf %23, %22 : vector<24x1xf32>
    %cst_7 = arith.constant dense<0.000000e+00> : vector<24xf32>
    %25 = vector.multi_reduction <add>, %19, %cst_7 [1] : vector<24x26xf32> to vector<24xf32>
    %26 = vector.shape_cast %25 : vector<24xf32> to vector<24x1xf32>
    %cst_8 = arith.constant 2.600000e+01 : f32
    %27 = vector.broadcast %cst_8 : f32 to vector<24x1xf32>
    %28 = arith.divf %26, %27 : vector<24x1xf32>
    %cst_9 = arith.constant 0.000000e+00 : f32
    %29 = vector.broadcast %cst_9 : f32 to vector<24x1xf32>
    %30 = arith.subf %29, %28 : vector<24x1xf32>
    %cst_10 = arith.constant 0.899999976 : f32
    %31 = vector.broadcast %cst_10 : f32 to vector<24x1xf32>
    %32 = arith.mulf %31, %24 : vector<24x1xf32>
    %cst_11 = arith.constant 1.000000e-01 : f32
    %33 = vector.broadcast %cst_11 : f32 to vector<24x1xf32>
    %34 = arith.mulf %33, %30 : vector<24x1xf32>
    %35 = arith.addf %32, %34 : vector<24x1xf32>
    %36 = vector.extract_strided_slice %35 {offsets = [0, 0], sizes = [8, 1], strides = [1, 1]} : vector<24x1xf32> to vector<8x1xf32>
    %37 = vector.shape_cast %36 : vector<8x1xf32> to vector<1x8x1xf32>
    %cst_12 = arith.constant dense<0.000000e+00> : vector<1xf32>
    %38 = vector.multi_reduction <add>, %37, %cst_12 [1, 2] : vector<1x8x1xf32> to vector<1xf32>
    %39 = vector.shape_cast %38 : vector<1xf32> to vector<1x1x1xf32>
    %40 = vector.extract %39[0, 0, 0] : f32 from vector<1x1x1xf32>
    %41 = vector.broadcast %40 : f32 to vector<1x1xf32>
    %cst_13 = arith.constant 1.250000e-01 : f32
    %42 = vector.broadcast %cst_13 : f32 to vector<1x1xf32>
    %43 = arith.mulf %41, %42 : vector<1x1xf32>
    %44 = vector.extract_strided_slice %35 {offsets = [8, 0], sizes = [16, 1], strides = [1, 1]} : vector<24x1xf32> to vector<16x1xf32>
    %45 = vector.shape_cast %44 : vector<16x1xf32> to vector<1x16x1xf32>
    %cst_14 = arith.constant dense<0.000000e+00> : vector<1xf32>
    %46 = vector.multi_reduction <add>, %45, %cst_14 [1, 2] : vector<1x16x1xf32> to vector<1xf32>
    %47 = vector.shape_cast %46 : vector<1xf32> to vector<1x1x1xf32>
    %48 = vector.extract %47[0, 0, 0] : f32 from vector<1x1x1xf32>
    %49 = vector.broadcast %48 : f32 to vector<1x1xf32>
    %cst_15 = arith.constant 6.250000e-02 : f32
    %50 = vector.broadcast %cst_15 : f32 to vector<1x1xf32>
    %51 = arith.mulf %49, %50 : vector<1x1xf32>
    %c0_16 = arith.constant 0 : index
    %c0_17 = arith.constant 0 : index
    %52 = vector.load %arg3[%c0_16, %c0_17] : memref<8x256xf32, #tpu.memory_space<vmem>>, vector<8x256xf32>
    %c0_18 = arith.constant 0 : index
    %c0_19 = arith.constant 0 : index
    %53 = vector.load %arg4[%c0_18, %c0_19] : memref<26x256xf32, #tpu.memory_space<vmem>>, vector<26x256xf32>
    %54 = tpu.iota {dimensions = array<i32: 0>} : vector<26x8xi32>
    %c0_20 = arith.constant 0 : index
    %c0_21 = arith.constant 0 : index
    %55 = vector.load %arg2[%c0_20, %c0_21] : memref<1x8xi32, #tpu.memory_space<vmem>>, vector<1x8xi32>
    %56 = vector.broadcast %55 : vector<1x8xi32> to vector<26x8xi32>
    %57 = arith.cmpi eq, %54, %56 : vector<26x8xi32>
    %58 = arith.extui %57 : vector<26x8xi1> to vector<26x8xi32>
    %59 = arith.sitofp %58 : vector<26x8xi32> to vector<26x8xf32>
    %cst_22 = arith.constant dense<0.000000e+00> : vector<26xf32>
    %60 = vector.multi_reduction <add>, %59, %cst_22 [1] : vector<26x8xf32> to vector<26xf32>
    %61 = vector.shape_cast %60 : vector<26xf32> to vector<26x1xf32>
    %cst_23 = arith.constant dense<0.000000e+00> : vector<26x256xf32>
    %62 = tpu.matmul %59, %52, %cst_23 {dimension_numbers = #tpu.dot_dimension_numbers<[1], [0], [0], [1], [0, 0, 1, 1], [], []>} : vector<26x8xf32>, vector<8x256xf32>, vector<26x256xf32> -> vector<26x256xf32>
    %cst_24 = arith.constant 0.000000e+00 : f32
    %63 = vector.broadcast %cst_24 : f32 to vector<26x1xf32>
    %64 = arith.cmpf ogt, %61, %63 : vector<26x1xf32>
    %cst_25 = arith.constant 1.000000e+00 : f32
    %65 = vector.broadcast %cst_25 : f32 to vector<26x1xf32>
    %66 = arith.maximumf %61, %65 : vector<26x1xf32>
    %67 = vector.broadcast %66 : vector<26x1xf32> to vector<26x256xf32>
    %68 = arith.divf %62, %67 : vector<26x256xf32>
    %69 = arith.subf %68, %53 : vector<26x256xf32>
    %cst_26 = arith.constant 0.000000e+00 : f32
    %70 = vector.shape_cast %64 : vector<26x1xi1> to vector<26x1xi1>
    %71 = vector.broadcast %70 : vector<26x1xi1> to vector<26x256xi1>
    %72 = vector.broadcast %cst_26 : f32 to vector<26x256xf32>
    %73 = arith.select %71, %69, %72 : vector<26x256xi1>, vector<26x256xf32>
    %74 = arith.extui %64 : vector<26x1xi1> to vector<26x1xi32>
    %75 = arith.sitofp %74 : vector<26x1xi32> to vector<26x1xf32>
    %76 = vector.shape_cast %75 : vector<26x1xf32> to vector<1x26x1xf32>
    %cst_27 = arith.constant dense<0.000000e+00> : vector<1xf32>
    %77 = vector.multi_reduction <add>, %76, %cst_27 [1, 2] : vector<1x26x1xf32> to vector<1xf32>
    %78 = vector.shape_cast %77 : vector<1xf32> to vector<1x1x1xf32>
    %79 = vector.extract %78[0, 0, 0] : f32 from vector<1x1x1xf32>
    %80 = vector.broadcast %79 : f32 to vector<1x1xf32>
    %cst_28 = arith.constant 1.000000e+00 : f32
    %81 = vector.broadcast %cst_28 : f32 to vector<1x1xf32>
    %82 = arith.maximumf %80, %81 : vector<1x1xf32>
    %83 = arith.mulf %73, %73 : vector<26x256xf32>
    %84 = vector.shape_cast %83 : vector<26x256xf32> to vector<1x26x256xf32>
    %cst_29 = arith.constant dense<0.000000e+00> : vector<1xf32>
    %85 = vector.multi_reduction <add>, %84, %cst_29 [1, 2] : vector<1x26x256xf32> to vector<1xf32>
    %86 = vector.shape_cast %85 : vector<1xf32> to vector<1x1x1xf32>
    %87 = vector.extract %86[0, 0, 0] : f32 from vector<1x1x1xf32>
    %88 = vector.broadcast %87 : f32 to vector<1x1xf32>
    %cst_30 = arith.constant 2.560000e+02 : f32
    %89 = vector.broadcast %cst_30 : f32 to vector<1x1xf32>
    %90 = arith.mulf %82, %89 : vector<1x1xf32>
    %91 = arith.divf %88, %90 : vector<1x1xf32>
    %cst_31 = arith.constant dense<0.000000e+00> : vector<256xf32>
    %92 = vector.multi_reduction <add>, %52, %cst_31 [0] : vector<8x256xf32> to vector<256xf32>
    %93 = vector.shape_cast %92 : vector<256xf32> to vector<1x256xf32>
    %cst_32 = arith.constant 8.000000e+00 : f32
    %94 = vector.broadcast %cst_32 : f32 to vector<1x256xf32>
    %95 = arith.divf %93, %94 : vector<1x256xf32>
    %96 = arith.mulf %95, %95 : vector<1x256xf32>
    %97 = vector.shape_cast %96 : vector<1x256xf32> to vector<1x1x256xf32>
    %cst_33 = arith.constant dense<0.000000e+00> : vector<1xf32>
    %98 = vector.multi_reduction <add>, %97, %cst_33 [1, 2] : vector<1x1x256xf32> to vector<1xf32>
    %99 = vector.shape_cast %98 : vector<1xf32> to vector<1x1x1xf32>
    %100 = vector.extract %99[0, 0, 0] : f32 from vector<1x1x1xf32>
    %101 = vector.broadcast %100 : f32 to vector<1x1xf32>
    %102 = math.sqrt %101 : vector<1x1xf32>
    %c0_34 = arith.constant 0 : index
    %c0_35 = arith.constant 0 : index
    %103 = vector.load %arg5[%c0_34, %c0_35] : memref<32x64xf32, #tpu.memory_space<vmem>>, vector<32x64xf32>
    %cst_36 = arith.constant dense<0.000000e+00> : vector<32x32xf32>
    %104 = tpu.matmul %103, %103, %cst_36 {dimension_numbers = #tpu.dot_dimension_numbers<[1], [1], [0], [0], [0, 0, 1, 0], [], []>} : vector<32x64xf32>, vector<32x64xf32>, vector<32x32xf32> -> vector<32x32xf32>
    %105 = arith.mulf %103, %103 : vector<32x64xf32>
    %cst_37 = arith.constant dense<0.000000e+00> : vector<32xf32>
    %106 = vector.multi_reduction <add>, %105, %cst_37 [1] : vector<32x64xf32> to vector<32xf32>
    %107 = vector.shape_cast %106 : vector<32xf32> to vector<32x1xf32>
    %108 = tpu.iota {dimensions = array<i32: 0>} : vector<32x32xi32>
    %109 = tpu.iota {dimensions = array<i32: 1>} : vector<32x32xi32>
    %110 = arith.cmpi eq, %108, %109 : vector<32x32xi32>
    %111 = arith.extui %110 : vector<32x32xi1> to vector<32x32xi32>
    %112 = arith.sitofp %111 : vector<32x32xi32> to vector<32x32xf32>
    %113 = arith.mulf %104, %112 : vector<32x32xf32>
    %cst_38 = arith.constant dense<0.000000e+00> : vector<32xf32>
    %114 = vector.multi_reduction <add>, %113, %cst_38 [0] : vector<32x32xf32> to vector<32xf32>
    %115 = vector.shape_cast %114 : vector<32xf32> to vector<1x32xf32>
    %116 = vector.broadcast %107 : vector<32x1xf32> to vector<32x32xf32>
    %117 = vector.broadcast %115 : vector<1x32xf32> to vector<32x32xf32>
    %118 = arith.addf %116, %117 : vector<32x32xf32>
    %cst_39 = arith.constant 2.000000e+00 : f32
    %119 = vector.broadcast %cst_39 : f32 to vector<32x32xf32>
    %120 = arith.mulf %119, %104 : vector<32x32xf32>
    %121 = arith.subf %118, %120 : vector<32x32xf32>
    %cst_40 = arith.constant 0.000000e+00 : f32
    %122 = vector.broadcast %cst_40 : f32 to vector<32x32xf32>
    %123 = arith.maximumf %121, %122 : vector<32x32xf32>
    %124 = vector.shape_cast %123 : vector<32x32xf32> to vector<1x32x32xf32>
    %cst_41 = arith.constant dense<0.000000e+00> : vector<1xf32>
    %125 = vector.multi_reduction <add>, %124, %cst_41 [1, 2] : vector<1x32x32xf32> to vector<1xf32>
    %126 = vector.shape_cast %125 : vector<1xf32> to vector<1x1x1xf32>
    %127 = vector.extract %126[0, 0, 0] : f32 from vector<1x1x1xf32>
    %128 = vector.broadcast %127 : f32 to vector<1x1xf32>
    %cst_42 = arith.constant 0.00100806449 : f32
    %129 = vector.broadcast %cst_42 : f32 to vector<1x1xf32>
    %130 = arith.mulf %128, %129 : vector<1x1xf32>
    %cst_43 = arith.constant 2.500000e-01 : f32
    %131 = vector.broadcast %cst_43 : f32 to vector<1x1xf32>
    %132 = arith.mulf %130, %131 : vector<1x1xf32>
    %133 = tpu.reciprocal %132 : vector<1x1xf32> -> vector<1x1xf32>
    %cst_44 = arith.constant 0.000000e+00 : f32
    %134 = vector.broadcast %cst_44 : f32 to vector<1x1xf32>
    %135 = arith.subf %134, %133 : vector<1x1xf32>
    %136 = vector.broadcast %135 : vector<1x1xf32> to vector<32x32xf32>
    %137 = arith.mulf %123, %136 : vector<32x32xf32>
    %cst_45 = arith.constant 0.000000e+00 : f32
    %138 = vector.broadcast %cst_45 : f32 to vector<32x32xf32>
    %cst_46 = arith.constant 1.000000e+00 : f32
    %139 = vector.broadcast %cst_46 : f32 to vector<32x32xf32>
    %140 = arith.mulf %137, %139 : vector<32x32xf32>
    %141 = math.exp %140 : vector<32x32xf32>
    %142 = arith.addf %138, %141 : vector<32x32xf32>
    %cst_47 = arith.constant 5.000000e-01 : f32
    %143 = vector.broadcast %cst_47 : f32 to vector<32x32xf32>
    %144 = arith.mulf %137, %143 : vector<32x32xf32>
    %145 = math.exp %144 : vector<32x32xf32>
    %146 = arith.addf %142, %145 : vector<32x32xf32>
    %cst_48 = arith.constant 2.500000e-01 : f32
    %147 = vector.broadcast %cst_48 : f32 to vector<32x32xf32>
    %148 = arith.mulf %137, %147 : vector<32x32xf32>
    %149 = math.exp %148 : vector<32x32xf32>
    %150 = arith.addf %146, %149 : vector<32x32xf32>
    %cst_49 = arith.constant 1.250000e-01 : f32
    %151 = vector.broadcast %cst_49 : f32 to vector<32x32xf32>
    %152 = arith.mulf %137, %151 : vector<32x32xf32>
    %153 = math.exp %152 : vector<32x32xf32>
    %154 = arith.addf %150, %153 : vector<32x32xf32>
    %cst_50 = arith.constant 6.250000e-02 : f32
    %155 = vector.broadcast %cst_50 : f32 to vector<32x32xf32>
    %156 = arith.mulf %137, %155 : vector<32x32xf32>
    %157 = math.exp %156 : vector<32x32xf32>
    %158 = arith.addf %154, %157 : vector<32x32xf32>
    %c16_i32 = arith.constant 16 : i32
    %159 = vector.broadcast %c16_i32 : i32 to vector<32x32xi32>
    %160 = arith.cmpi slt, %108, %159 : vector<32x32xi32>
    %cst_51 = arith.constant 1.000000e+00 : f32
    %cst_52 = arith.constant -1.000000e+00 : f32
    %161 = vector.broadcast %cst_51 : f32 to vector<32x32xf32>
    %162 = vector.broadcast %cst_52 : f32 to vector<32x32xf32>
    %163 = arith.select %160, %161, %162 : vector<32x32xi1>, vector<32x32xf32>
    %c16_i32_53 = arith.constant 16 : i32
    %164 = vector.broadcast %c16_i32_53 : i32 to vector<32x32xi32>
    %165 = arith.cmpi slt, %109, %164 : vector<32x32xi32>
    %cst_54 = arith.constant 1.000000e+00 : f32
    %cst_55 = arith.constant -1.000000e+00 : f32
    %166 = vector.broadcast %cst_54 : f32 to vector<32x32xf32>
    %167 = vector.broadcast %cst_55 : f32 to vector<32x32xf32>
    %168 = arith.select %165, %166, %167 : vector<32x32xi1>, vector<32x32xf32>
    %169 = arith.mulf %163, %168 : vector<32x32xf32>
    %170 = arith.mulf %169, %158 : vector<32x32xf32>
    %171 = vector.shape_cast %170 : vector<32x32xf32> to vector<1x32x32xf32>
    %cst_56 = arith.constant dense<0.000000e+00> : vector<1xf32>
    %172 = vector.multi_reduction <add>, %171, %cst_56 [1, 2] : vector<1x32x32xf32> to vector<1xf32>
    %173 = vector.shape_cast %172 : vector<1xf32> to vector<1x1x1xf32>
    %174 = vector.extract %173[0, 0, 0] : f32 from vector<1x1x1xf32>
    %175 = vector.broadcast %174 : f32 to vector<1x1xf32>
    %cst_57 = arith.constant 3.906250e-03 : f32
    %176 = vector.broadcast %cst_57 : f32 to vector<1x1xf32>
    %177 = arith.mulf %175, %176 : vector<1x1xf32>
    %178 = arith.addf %43, %51 : vector<1x1xf32>
    %cst_58 = arith.constant 1.000000e+00 : f32
    %179 = vector.broadcast %cst_58 : f32 to vector<1x1xf32>
    %180 = arith.mulf %179, %178 : vector<1x1xf32>
    %cst_59 = arith.constant 1.000000e-01 : f32
    %181 = vector.broadcast %cst_59 : f32 to vector<1x1xf32>
    %182 = arith.mulf %181, %91 : vector<1x1xf32>
    %183 = arith.addf %180, %182 : vector<1x1xf32>
    %cst_60 = arith.constant 9.99999974E-5 : f32
    %184 = vector.broadcast %cst_60 : f32 to vector<1x1xf32>
    %185 = arith.mulf %184, %102 : vector<1x1xf32>
    %186 = arith.addf %183, %185 : vector<1x1xf32>
    %cst_61 = arith.constant 1.000000e-01 : f32
    %187 = vector.broadcast %cst_61 : f32 to vector<1x1xf32>
    %188 = arith.mulf %187, %177 : vector<1x1xf32>
    %189 = arith.addf %186, %188 : vector<1x1xf32>
    %190 = vector.extract %189[0, 0] : f32 from vector<1x1xf32>
    %c0_62 = arith.constant 0 : index
    %c0_63 = arith.constant 0 : index
    %191 = memref.load %arg6[%c0_62, %c0_63] : memref<1x1xf32, #tpu.memory_space<smem>>
    memref.store %190, %arg6[%c0_62, %c0_63] : memref<1x1xf32, #tpu.memory_space<smem>>
    return
  }
}

</mosaic_0001>

<llo_original>
// kernel: tpu_custom_call.1
$region0: #{tpu_custom_call.1}
  #allocation0 [shape = 'u32[]', space=smem, size = 0x4, offset = 0x4, fixed_abs, tag = 'smem constant byte address 0x4 - core index']
  #allocation1 [shape = 'u32[72,128]{1,0:T(1,128)}', space=vmem, size = 0x9000, scoped, tag = 'internal scratch']
  %s0 = inlined_call_operand.vmem [shape: f32[24,26], index: 0, kind: input, shape index: {}]
  %s1 = inlined_call_operand.vmem [shape: s32[24,1], index: 1, kind: input, shape index: {}]
  %s2 = inlined_call_operand.vmem [shape: s32[1,8], index: 2, kind: input, shape index: {}]
  %s3 = inlined_call_operand.hbm [shape: f32[8,256], index: 3, kind: input, shape index: {}]
  %s4 = inlined_call_operand.hbm [shape: f32[26,256], index: 4, kind: input, shape index: {}]
  %s5 = inlined_call_operand.hbm [shape: f32[32,64], index: 5, kind: input, shape index: {}]
  %s6 = inlined_call_operand.hbm [shape: f32[1,1], index: 6, kind: output, shape index: {}]
  %s7 = sld [smem:[#allocation0]]
  $region46: #{tpu_custom_call.1} parent=0
    _
  %s9 = ssub.s32 1, %s7
  %s10 = scalar_select 0, %s9, %s7
  $region1: #{tpu_custom_call.1} parent=0
    #allocation2 [shape = 'u8[8192]{0}', space=vmem, size = 0x2000, scoped, tag = 'input window, operand 3, single buffered']
    #allocation3 [shape = 's32[1]{0}', space=sflag, size = 0x4, scoped, tag = 'scoped memory for tpu_custom_call.1']
    #allocation4 [shape = 's32[1]{0}', space=sflag, size = 0x4, scoped, tag = 'scoped memory for tpu_custom_call.1']
    #allocation5 [shape = 'u8[32768]{0}', space=vmem, size = 0x8000, scoped, tag = 'input window, operand 4, single buffered']
    #allocation6 [shape = 's32[1]{0}', space=sflag, size = 0x4, scoped, tag = 'scoped memory for tpu_custom_call.1']
    #allocation7 [shape = 'u8[16384]{0}', space=vmem, size = 0x4000, scoped, tag = 'input window, operand 5, single buffered']
    #allocation8 [shape = 'u8[512]{0}', space=smem, size = 0x200, scoped, tag = 'output window, operand 0, single buffered']
    %11 = vsyncpa [#allocation3], 0
    %12 = vsyncpa [#allocation6], 0
    %13 = vsyncpa [#allocation4], 0
    // Predicated region
    $region2: #{tpu_custom_call.1} parent=1 // pred_check
      _
    $region3: #{tpu_custom_call.1} parent=1 // pred_check_branch
      %15 = sbr.rel (0) target = $region5
    $region4: #{tpu_custom_call.1} parent=1 // pred_region
      _
    $region5: #{tpu_custom_call.1} parent=1 // pred_fallthru
      _
    // Predicated region
    $region6: #{tpu_custom_call.1} parent=1 // pred_check
      _
    $region7: #{tpu_custom_call.1} parent=1 // pred_check_branch
      %17 = sbr.rel (0) target = $region9
    $region8: #{tpu_custom_call.1} parent=1 // pred_region
      _
    $region9: #{tpu_custom_call.1} parent=1 // pred_fallthru
      _
    // Predicated region
    $region10: #{tpu_custom_call.1} parent=1 // pred_check
      _
    $region11: #{tpu_custom_call.1} parent=1 // pred_check_branch
      %19 = sbr.rel (0) target = $region13
    $region12: #{tpu_custom_call.1} parent=1 // pred_region
      _
    $region13: #{tpu_custom_call.1} parent=1 // pred_fallthru
      _
    // Predicated region
    $region14: #{tpu_custom_call.1} parent=1 // pred_check
      _
    $region15: #{tpu_custom_call.1} parent=1 // pred_check_branch
      %21 = sbr.rel (0) target = $region17
    $region16: #{tpu_custom_call.1} parent=1 // pred_region
      %23 = vsyncadd [#allocation3], 0
      %s25 = sshll.u32 %s3, 4
      %s26 = int_to_ptr.hbm [resolvable:$true] %s25
      %s27 = sshll.u32 [#allocation2], 4
      %s28 = int_to_ptr.vmem [resolvable:$true] %s27
      %30 = dma.hbm_to_vmem [thread:$0]  %s26, 256, %s28, [#allocation3]
    $region17: #{tpu_custom_call.1} parent=1 // pred_fallthru
      _
    // Predicated region
    $region18: #{tpu_custom_call.1} parent=1 // pred_check
      _
    $region19: #{tpu_custom_call.1} parent=1 // pred_check_branch
      %32 = sbr.rel (0) target = $region21
    $region20: #{tpu_custom_call.1} parent=1 // pred_region
      %34 = vsyncadd [#allocation6], 0
      %s35 = sshll.u32 %s4, 4
      %s36 = int_to_ptr.hbm [resolvable:$true] %s35
      %s37 = sshll.u32 [#allocation5], 4
      %s38 = int_to_ptr.vmem [resolvable:$true] %s37
      %43 = dma.hbm_to_vmem [thread:$0]  %s36, 1024, %s38, [#allocation6], 256, 256, 16
    $region21: #{tpu_custom_call.1} parent=1 // pred_fallthru
      _
    // Predicated region
    $region22: #{tpu_custom_call.1} parent=1 // pred_check
      _
    $region23: #{tpu_custom_call.1} parent=1 // pred_check_branch
      %45 = sbr.rel (0) target = $region25
    $region24: #{tpu_custom_call.1} parent=1 // pred_region
      %47 = vsyncadd [#allocation6], 0
      %s48 = sshll.u32 %s5, 4
      %s49 = int_to_ptr.hbm [resolvable:$true] %s48
      %s50 = sshll.u32 [#allocation7], 4
      %s51 = int_to_ptr.vmem [resolvable:$true] %s50
      %56 = dma.hbm_to_vmem [thread:$0]  %s49, 512, %s51, [#allocation6], 128, 128, 8
    $region25: #{tpu_custom_call.1} parent=1 // pred_fallthru
      _
    // Predicated region
    $region26: #{tpu_custom_call.1} parent=1 // pred_check
      _
    $region27: #{tpu_custom_call.1} parent=1 // pred_check_branch
      %58 = sbr.rel (0) target = $region29
    $region28: #{tpu_custom_call.1} parent=1 // pred_region
      %60 = dma.done [#allocation3], 256
    $region29: #{tpu_custom_call.1} parent=1 // pred_fallthru
      _
    // Predicated region
    $region30: #{tpu_custom_call.1} parent=1 // pred_check
      _
    $region31: #{tpu_custom_call.1} parent=1 // pred_check_branch
      %62 = sbr.rel (0) target = $region33
    $region32: #{tpu_custom_call.1} parent=1 // pred_region
      %64 = dma.done [#allocation6], 1024
    $region33: #{tpu_custom_call.1} parent=1 // pred_fallthru
      _
    // Predicated region
    $region34: #{tpu_custom_call.1} parent=1 // pred_check
      _
    $region35: #{tpu_custom_call.1} parent=1 // pred_check_branch
      %66 = sbr.rel (0) target = $region37
    $region36: #{tpu_custom_call.1} parent=1 // pred_region
      %68 = dma.done [#allocation6], 512
    $region37: #{tpu_custom_call.1} parent=1 // pred_fallthru
      _
    %v69 = vld [vmem:[%s0] sm:$0xff]
    %v70 = vld [vmem:[%s0 + $0x8] sm:$0xff]
    %v71 = vld [vmem:[%s0 + $0x10] sm:$0xff]
    %v72 = vlaneseq
    %v73 = vand.u32 %v72, 127
    %v74 = vld [vmem:[%s1] sm:$0xff]
    %v75 = vld [vmem:[%s1 + $0x8] sm:$0xff]
    %v76 = vld [vmem:[%s1 + $0x10] sm:$0xff]
    %77 = vset.pattern.permute.xlu0 0
    %78 = vperm.xlu0 %77, %v74
    %v79 = vpop.permute.xlu0 %78
    %80 = vset.pattern.permute.xlu0 0
    %81 = vperm.xlu0 %80, %v75
    %v82 = vpop.permute.xlu0 %81
    %83 = vset.pattern.permute.xlu0 0
    %84 = vperm.xlu0 %83, %v76
    %v85 = vpop.permute.xlu0 %84
    %vm86 = vcmp.eq.s32.totalorder %v73, %v79
    %vm87 = vcmp.eq.s32.totalorder %v73, %v82
    %vm88 = vcmp.eq.s32.totalorder %v73, %v85
    %v89 = vsel %vm86, 1, 0
    %v90 = vsel %vm87, 1, 0
    %v91 = vsel %vm88, 1, 0
    %v92 = vcvt.s32.f32 %v89
    %v93 = vcvt.s32.f32 %v90
    %v94 = vcvt.s32.f32 %v91
    %vm95 = vcmask 211968
    %v96 = vsel %vm95, %v69, -inf
    %97 = vmax.xlane.f32.xlu0 %v96
    %v98 = vpop.xlane.xlu0 %97
    %v99 = vsel %vm95, %v70, -inf
    %100 = vmax.xlane.f32.xlu0 %v99
    %v101 = vpop.xlane.xlu0 %100
    %v102 = vsel %vm95, %v71, -inf
    %103 = vmax.xlane.f32.xlu0 %v102
    %v104 = vpop.xlane.xlu0 %103
    %v105 = vsub.f32 %v69, %v98
    %v106 = vsub.f32 %v70, %v101
    %v107 = vsub.f32 %v71, %v104
    %v108 = vmul.f32 %v105, 1.442695
    %v109 = vpow.pop %v108
    %v110 = vmul.f32 %v106, 1.442695
    %v111 = vpow.pop %v110
    %v112 = vmul.f32 %v107, 1.442695
    %v113 = vpow.pop %v112
    %v114 = vsel %vm95, %v109, 0.0
    %115 = vadd.xlane.f32.xlu0 %v114
    %v116 = vpop.xlane.xlu0 %115
    %v117 = vsel %vm95, %v111, 0.0
    %118 = vadd.xlane.f32.xlu0 %v117
    %v119 = vpop.xlane.xlu0 %118
    %v120 = vsel %vm95, %v113, 0.0
    %121 = vadd.xlane.f32.xlu0 %v120
    %v122 = vpop.xlane.xlu0 %121
    %v123 = vlog2.pop %v116
    %v124 = vmul.f32 %v123, 0.6931472
    %v125 = vlog2.pop %v119
    %v126 = vmul.f32 %v125, 0.6931472
    %v127 = vlog2.pop %v122
    %v128 = vmul.f32 %v127, 0.6931472
    %v129 = vadd.f32 %v98, %v124
    %v130 = vadd.f32 %v101, %v126
    %v131 = vadd.f32 %v104, %v128
    %v132 = vsub.f32 %v69, %v129
    %v133 = vsub.f32 %v70, %v130
    %v134 = vsub.f32 %v71, %v131
    %v135 = vmul.f32 %v132, %v92
    %v136 = vmul.f32 %v133, %v93
    %v137 = vmul.f32 %v134, %v94
    %v138 = vsel %vm95, %v135, 0.0
    %139 = vadd.xlane.f32.xlu0 %v138
    %v140 = vpop.xlane.xlu0 %139
    %v141 = vsel %vm95, %v136, 0.0
    %142 = vadd.xlane.f32.xlu0 %v141
    %v143 = vpop.xlane.xlu0 %142
    %v144 = vsel %vm95, %v137, 0.0
    %145 = vadd.xlane.f32.xlu0 %v144
    %v146 = vpop.xlane.xlu0 %145
    %v147 = vsub.f32 0.0, %v140
    %v148 = vsub.f32 0.0, %v143
    %v149 = vsub.f32 0.0, %v146
    %v150 = vsel %vm95, %v132, 0.0
    %151 = vadd.xlane.f32.xlu0 %v150
    %v152 = vpop.xlane.xlu0 %151
    %v153 = vsel %vm95, %v133, 0.0
    %154 = vadd.xlane.f32.xlu0 %v153
    %v155 = vpop.xlane.xlu0 %154
    %v156 = vsel %vm95, %v134, 0.0
    %157 = vadd.xlane.f32.xlu0 %v156
    %v158 = vpop.xlane.xlu0 %157
    %v159 = vrcp.pop 26.0
    %v160 = vmul.f32 26.0, %v159
    %v161 = vsub.f32 1.0, %v160
    %v162 = vmul.f32 %v159, %v161
    %v163 = vadd.f32 %v159, %v162
    %vm164 = vweird.f32 %v159
    %v165 = vsel %vm164, %v159, %v163
    %v166 = vmul.f32 %v152, %v165
    %v167 = vmul.f32 %v155, %v165
    %v168 = vmul.f32 %v158, %v165
    %v169 = vsub.f32 0.0, %v166
    %v170 = vsub.f32 0.0, %v167
    %v171 = vsub.f32 0.0, %v168
    %v172 = vmul.f32 %v147, 0.9
    %v173 = vmul.f32 %v148, 0.9
    %v174 = vmul.f32 %v149, 0.9
    %v175 = vmul.f32 %v169, 0.1
    %v176 = vmul.f32 %v170, 0.1
    %v177 = vmul.f32 %v171, 0.1
    %v178 = vadd.f32 %v172, %v175
    %v179 = vadd.f32 %v173, %v176
    %v180 = vadd.f32 %v174, %v177
    %vm181 = vcmask 7168
    %v182 = vsel %vm181, %v178, 0.0
    %183 = vadd.xlane.f32.xlu0 %v182
    %v184 = vpop.xlane.xlu0 %183
    %v185 = vrot.slane %v184, 4
    %v186 = vadd.f32 %v184, %v185
    %v187 = vrot.slane %v186, 2
    %v188 = vadd.f32 %v186, %v187
    %v189 = vrot.slane %v188, 1
    %v190 = vadd.f32 %v188, %v189
    %s191 = vtos %v190
    %v192 = vstv %s191
    %v193 = vmul.f32 %v192, 0.125
    %v194 = vsel %vm181, %v179, 0.0
    %v195 = vsel %vm181, %v180, 0.0
    %v196 = vadd.f32 %v194, %v195
    %197 = vadd.xlane.f32.xlu0 %v196
    %v198 = vpop.xlane.xlu0 %197
    %v199 = vrot.slane %v198, 4
    %v200 = vadd.f32 %v198, %v199
    %v201 = vrot.slane %v200, 2
    %v202 = vadd.f32 %v200, %v201
    %v203 = vrot.slane %v202, 1
    %v204 = vadd.f32 %v202, %v203
    %s205 = vtos %v204
    %v206 = vstv %s205
    %v207 = vmul.f32 %v206, 0.0625
    %v208 = vld [vmem:[#allocation2] sm:$0xff]
    %v209 = vld [vmem:[#allocation2 + $0x8] sm:$0xff]
    %v210 = vld [vmem:[#allocation5] sm:$0xff]
    %v211 = vld [vmem:[#allocation5 + $0x8] sm:$0xff]
    %v212 = vld [vmem:[#allocation5 + $0x10] sm:$0xff]
    %v213 = vld [vmem:[#allocation5 + $0x18] sm:$0xff]
    %v214 = vld [vmem:[#allocation5 + $0x20] sm:$0xff]
    %v215 = vld [vmem:[#allocation5 + $0x28] sm:$0xff]
    %v216 = vld [vmem:[#allocation5 + $0x30] sm:$0x3]
    %v217 = vld [vmem:[#allocation5 + $0x38] sm:$0x3]
    %v218 = vlaneseq
    %v219 = vshrl.u32 %v218, 7
    %v220 = vadd.s32 %v219, 8
    %v221 = vadd.s32 %v219, 16
    %v222 = vadd.s32 %v219, 24
    %v223 = vld [vmem:[%s2] sm:$0x1]
    %v224 = vperm.slane %v223, 0
    %vm225 = vcmp.eq.s32.totalorder %v219, %v224
    %vm226 = vcmp.eq.s32.totalorder %v220, %v224
    %vm227 = vcmp.eq.s32.totalorder %v221, %v224
    %vm228 = vcmp.eq.s32.totalorder %v222, %v224
    %v229 = vsel %vm225, 1, 0
    %v230 = vsel %vm226, 1, 0
    %v231 = vsel %vm227, 1, 0
    %v232 = vsel %vm228, 1, 0
    %v233 = vcvt.s32.f32 %v229
    %v234 = vcvt.s32.f32 %v230
    %v235 = vcvt.s32.f32 %v231
    %v236 = vcvt.s32.f32 %v232
    %vm237 = vcmask 64512
    %v238 = vsel %vm237, %v233, 0.0
    %239 = vadd.xlane.f32.xlu0 %v238
    %v240 = vpop.xlane.xlu0 %239
    %v241 = vsel %vm237, %v234, 0.0
    %242 = vadd.xlane.f32.xlu0 %v241
    %v243 = vpop.xlane.xlu0 %242
    %v244 = vsel %vm237, %v235, 0.0
    %245 = vadd.xlane.f32.xlu0 %v244
    %v246 = vpop.xlane.xlu0 %245
    %vm247 = vcmask 58368
    %v248 = vsel %vm247, %v236, 0.0
    %249 = vadd.xlane.f32.xlu0 %v248
    %v250 = vpop.xlane.xlu0 %249
    %v252 = vsel %vm237, %v233, 0
    %v255 = vsel %vm237, %v234, 0
    %v258 = vsel %vm237, %v235, 0
    %v261 = vsel %vm237, %v236, 0
    %263 = vmatpush.msra.mxu0 0.0
    %264 = vmatpush.msra.mxu0 0.0
    %265 = vmatpush.msra.mxu0 0.0
    %266 = vmatpush.msra.mxu0 0.0
    %267 = vmatpush.msra.mxu0 0.0
    %268 = vmatpush.msra.mxu0 0.0
    %269 = vmatpush.msra.mxu0 0.0
    %270 = vmatpush.msra.mxu0 0.0
    %271 = vmatpush.msra.mxu0 0.0
    %272 = vmatpush.msra.mxu0 0.0
    %273 = vmatpush.msra.mxu0 0.0
    %274 = vmatpush.msra.mxu0 0.0
    %275 = vmatpush.msra.mxu0 0.0
    %276 = vmatpush.msra.mxu0 0.0
    %277 = vmatpush.msra.mxu0 0.0
    %278 = vmatpush.msra.mxu0 %v208
    %279 = vmatmul.f32.gmra.mxu0 %v252
    %v280 = vpop.f32.mrf.mxu0
    %v281 = vadd.f32 0.0, %v280
    %282 = vmatmul.f32.gmra.mxu0 %v255
    %v283 = vpop.f32.mrf.mxu0
    %v284 = vadd.f32 0.0, %v283
    %285 = vmatmul.f32.gmra.mxu0 %v258
    %v286 = vpop.f32.mrf.mxu0
    %v287 = vadd.f32 0.0, %v286
    %288 = vmatmul.f32.gmra.mxu0 %v261
    %v289 = vpop.f32.mrf.mxu0
    %v290 = vadd.f32 0.0, %v289
    %291 = vdwg.mxu0
    %292 = vmatpush.msra.mxu0 0.0
    %293 = vmatpush.msra.mxu0 0.0
    %294 = vmatpush.msra.mxu0 0.0
    %295 = vmatpush.msra.mxu0 0.0
    %296 = vmatpush.msra.mxu0 0.0
    %297 = vmatpush.msra.mxu0 0.0
    %298 = vmatpush.msra.mxu0 0.0
    %299 = vmatpush.msra.mxu0 0.0
    %300 = vmatpush.msra.mxu0 0.0
    %301 = vmatpush.msra.mxu0 0.0
    %302 = vmatpush.msra.mxu0 0.0
    %303 = vmatpush.msra.mxu0 0.0
    %304 = vmatpush.msra.mxu0 0.0
    %305 = vmatpush.msra.mxu0 0.0
    %306 = vmatpush.msra.mxu0 0.0
    %307 = vmatpush.msra.mxu0 %v209
    %308 = vmatmul.f32.gmra.mxu0 %v252
    %v309 = vpop.f32.mrf.mxu0
    %v310 = vadd.f32 0.0, %v309
    %311 = vmatmul.f32.gmra.mxu0 %v255
    %v312 = vpop.f32.mrf.mxu0
    %v313 = vadd.f32 0.0, %v312
    %314 = vmatmul.f32.gmra.mxu0 %v258
    %v315 = vpop.f32.mrf.mxu0
    %v316 = vadd.f32 0.0, %v315
    %317 = vmatmul.f32.gmra.mxu0 %v261
    %v318 = vpop.f32.mrf.mxu0
    %v319 = vadd.f32 0.0, %v318
    %320 = vdwg.mxu0
    %vm321 = vcmp.gt.f32.partialorder %v240, 0.0
    %vm322 = vcmp.gt.f32.partialorder %v243, 0.0
    %vm323 = vcmp.gt.f32.partialorder %v246, 0.0
    %vm324 = vcmp.gt.f32.partialorder %v250, 0.0
    %v325 = vmax.f32 %v240, 1.0
    %v326 = vmax.f32 %v243, 1.0
    %v327 = vmax.f32 %v246, 1.0
    %v328 = vmax.f32 %v250, 1.0
    %v329 = vrcp.pop %v325
    %v330 = vmul.f32 %v325, %v329
    %v331 = vsub.f32 1.0, %v330
    %v332 = vmul.f32 %v329, %v331
    %v333 = vadd.f32 %v329, %v332
    %vm334 = vweird.f32 %v325
    %vm335 = vweird.f32 %v329
    %vm336 = vmor %vm334, %vm335
    %v337 = vsel %vm336, %v329, %v333
    %v338 = vand.u32 2147483647, %v325
    %vm339 = vcmp.eq.f32.partialorder %v338, 8.507059e+37
    %v340 = vand.u32 %v325, 2147483648
    %v341 = vor.u32 1.1754944e-38, %v340
    %v342 = vsel %vm339, %v341, %v337
    %v343 = vmul.f32 %v281, %v342
    %v344 = vmul.f32 %v310, %v342
    %v345 = vrcp.pop %v326
    %v346 = vmul.f32 %v326, %v345
    %v347 = vsub.f32 1.0, %v346
    %v348 = vmul.f32 %v345, %v347
    %v349 = vadd.f32 %v345, %v348
    %vm350 = vweird.f32 %v326
    %vm351 = vweird.f32 %v345
    %vm352 = vmor %vm350, %vm351
    %v353 = vsel %vm352, %v345, %v349
    %v354 = vand.u32 2147483647, %v326
    %vm355 = vcmp.eq.f32.partialorder %v354, 8.507059e+37
    %v356 = vand.u32 %v326, 2147483648
    %v357 = vor.u32 1.1754944e-38, %v356
    %v358 = vsel %vm355, %v357, %v353
    %v359 = vmul.f32 %v284, %v358
    %v360 = vmul.f32 %v313, %v358
    %v361 = vrcp.pop %v327
    %v362 = vmul.f32 %v327, %v361
    %v363 = vsub.f32 1.0, %v362
    %v364 = vmul.f32 %v361, %v363
    %v365 = vadd.f32 %v361, %v364
    %vm366 = vweird.f32 %v327
    %vm367 = vweird.f32 %v361
    %vm368 = vmor %vm366, %vm367
    %v369 = vsel %vm368, %v361, %v365
    %v370 = vand.u32 2147483647, %v327
    %vm371 = vcmp.eq.f32.partialorder %v370, 8.507059e+37
    %v372 = vand.u32 %v327, 2147483648
    %v373 = vor.u32 1.1754944e-38, %v372
    %v374 = vsel %vm371, %v373, %v369
    %v375 = vmul.f32 %v287, %v374
    %v376 = vmul.f32 %v316, %v374
    %v377 = vrcp.pop %v328
    %v378 = vmul.f32 %v328, %v377
    %v379 = vsub.f32 1.0, %v378
    %v380 = vmul.f32 %v377, %v379
    %v381 = vadd.f32 %v377, %v380
    %vm382 = vweird.f32 %v328
    %vm383 = vweird.f32 %v377
    %vm384 = vmor %vm382, %vm383
    %v385 = vsel %vm384, %v377, %v381
    %v386 = vand.u32 2147483647, %v328
    %vm387 = vcmp.eq.f32.partialorder %v386, 8.507059e+37
    %v388 = vand.u32 %v328, 2147483648
    %v389 = vor.u32 1.1754944e-38, %v388
    %v390 = vsel %vm387, %v389, %v385
    %v391 = vmul.f32 %v290, %v390
    %v392 = vmul.f32 %v319, %v390
    %v393 = vsub.f32 %v343, %v210
    %v394 = vsub.f32 %v344, %v211
    %v395 = vsub.f32 %v359, %v212
    %v396 = vsub.f32 %v360, %v213
    %v397 = vsub.f32 %v375, %v214
    %v398 = vsub.f32 %v376, %v215
    %v399 = vsub.f32 %v391, %v216
    %v400 = vsub.f32 %v392, %v217
    %v401 = vsel %vm321, 1, 0
    %v402 = vsel %vm322, 1, 0
    %v403 = vsel %vm323, 1, 0
    %v404 = vsel %vm324, 1, 0
    %vm405 = vcmp.eq.s32.totalorder %v401, 1
    %vm406 = vcmp.eq.s32.totalorder %v402, 1
    %vm407 = vcmp.eq.s32.totalorder %v403, 1
    %vm408 = vcmp.eq.s32.totalorder %v404, 1
    %v409 = vsel %vm405, %v393, 0.0
    %v410 = vsel %vm405, %v394, 0.0
    %v411 = vsel %vm406, %v395, 0.0
    %v412 = vsel %vm406, %v396, 0.0
    %v413 = vsel %vm407, %v397, 0.0
    %v414 = vsel %vm407, %v398, 0.0
    %v415 = vsel %vm408, %v399, 0.0
    %v416 = vsel %vm408, %v400, 0.0
    %v417 = vcvt.s32.f32 %v401
    %v418 = vcvt.s32.f32 %v402
    %v419 = vcvt.s32.f32 %v403
    %v420 = vcvt.s32.f32 %v404
    %v421 = vsel %vm181, %v417, 0.0
    %v422 = vsel %vm181, %v418, 0.0
    %v423 = vadd.f32 %v421, %v422
    %v424 = vsel %vm181, %v419, 0.0
    %v425 = vadd.f32 %v423, %v424
    %vm426 = vcmask 1024
    %v427 = vsel %vm426, %v420, 0.0
    %v428 = vadd.f32 %v425, %v427
    %429 = vadd.xlane.f32.xlu0 %v428
    %v430 = vpop.xlane.xlu0 %429
    %v431 = vrot.slane %v430, 4
    %v432 = vadd.f32 %v430, %v431
    %v433 = vrot.slane %v432, 2
    %v434 = vadd.f32 %v432, %v433
    %v435 = vrot.slane %v434, 1
    %v436 = vadd.f32 %v434, %v435
    %s437 = vtos %v436
    %v438 = vstv %s437
    %v439 = vmax.f32 %v438, 1.0
    %v440 = vmul.f32 %v409, %v409
    %v441 = vmul.f32 %v410, %v410
    %v442 = vmul.f32 %v411, %v411
    %v443 = vmul.f32 %v412, %v412
    %v444 = vmul.f32 %v413, %v413
    %v445 = vmul.f32 %v414, %v414
    %v446 = vmul.f32 %v415, %v415
    %v447 = vmul.f32 %v416, %v416
    %v448 = vadd.f32 %v440, %v441
    %v449 = vadd.f32 %v448, %v442
    %v450 = vadd.f32 %v449, %v443
    %v451 = vadd.f32 %v450, %v444
    %v452 = vadd.f32 %v451, %v445
    %vm453 = vcmask 1041408
    %v454 = vsel %vm453, %v446, 0.0
    %v455 = vadd.f32 %v452, %v454
    %v456 = vsel %vm453, %v447, 0.0
    %v457 = vadd.f32 %v455, %v456
    %458 = vadd.xlane.f32.xlu0 %v457
    %v459 = vpop.xlane.xlu0 %458
    %v460 = vrot.slane %v459, 4
    %v461 = vadd.f32 %v459, %v460
    %v462 = vrot.slane %v461, 2
    %v463 = vadd.f32 %v461, %v462
    %v464 = vrot.slane %v463, 1
    %v465 = vadd.f32 %v463, %v464
    %s466 = vtos %v465
    %v467 = vstv %s466
    %v468 = vmul.f32 %v439, 256.0
    %v469 = vrcp.pop %v468
    %v470 = vmul.f32 %v468, %v469
    %v471 = vsub.f32 1.0, %v470
    %v472 = vmul.f32 %v469, %v471
    %v473 = vadd.f32 %v469, %v472
    %vm474 = vweird.f32 %v468
    %vm475 = vweird.f32 %v469
    %vm476 = vmor %vm474, %vm475
    %v477 = vsel %vm476, %v469, %v473
    %v478 = vand.u32 2147483647, %v468
    %vm479 = vcmp.eq.f32.partialorder %v478, 8.507059e+37
    %v480 = vand.u32 %v468, 2147483648
    %v481 = vor.u32 1.1754944e-38, %v480
    %v482 = vsel %vm479, %v481, %v477
    %v483 = vmul.f32 %v467, %v482
    %v484 = vrot.slane %v208, 4
    %v485 = vadd.f32 %v208, %v484
    %v486 = vrot.slane %v485, 2
    %v487 = vadd.f32 %v485, %v486
    %v488 = vrot.slane %v487, 1
    %v489 = vadd.f32 %v487, %v488
    %v490 = vrot.slane %v209, 4
    %v491 = vadd.f32 %v209, %v490
    %v492 = vrot.slane %v491, 2
    %v493 = vadd.f32 %v491, %v492
    %v494 = vrot.slane %v493, 1
    %v495 = vadd.f32 %v493, %v494
    %v496 = vrcp.pop 8.0
    %v497 = vmul.f32 8.0, %v496
    %v498 = vsub.f32 1.0, %v497
    %v499 = vmul.f32 %v496, %v498
    %v500 = vadd.f32 %v496, %v499
    %vm501 = vweird.f32 %v496
    %v502 = vsel %vm501, %v496, %v500
    %v503 = vmul.f32 %v489, %v502
    %v504 = vmul.f32 %v495, %v502
    %v505 = vmul.f32 %v503, %v503
    %v506 = vmul.f32 %v504, %v504
    %vm507 = vcmask 1040384
    %v508 = vsel %vm507, %v505, 0.0
    %v509 = vsel %vm507, %v506, 0.0
    %v510 = vadd.f32 %v508, %v509
    %511 = vadd.xlane.f32.xlu0 %v510
    %v512 = vpop.xlane.xlu0 %511
    %v513 = vrot.slane %v512, 4
    %v514 = vadd.f32 %v512, %v513
    %v515 = vrot.slane %v514, 2
    %v516 = vadd.f32 %v514, %v515
    %v517 = vrot.slane %v516, 1
    %v518 = vadd.f32 %v516, %v517
    %s519 = vtos %v518
    %v520 = vstv %s519
    %v521 = vrsqrt.pop %v520
    %v522 = vmul.f32 %v521, %v520
    %v523 = vmul.f32 %v522, %v521
    %v524 = vmul.f32 0.5, %v523
    %v525 = vsub.f32 1.5, %v524
    %v526 = vmul.f32 %v521, %v525
    %v527 = vmul.f32 %v520, %v526
    %vm528 = vcmp.eq.f32.partialorder %v520, inf
    %v529 = vsel %vm528, %v520, %v527
    %vm530 = vcmp.eq.f32.partialorder %v520, 0.0
    %v531 = vand.u32 %v520, 2147483648
    %v532 = vsel %vm530, %v531, %v529
    %v533 = vld [vmem:[#allocation7] sm:$0xff]
    %v534 = vld [vmem:[#allocation7 + $0x8] sm:$0xff]
    %v535 = vld [vmem:[#allocation7 + $0x10] sm:$0xff]
    %v536 = vld [vmem:[#allocation7 + $0x18] sm:$0xff]
    %vm537 = vcmask 523264
    %v539 = vsel %vm537, %v533, 0
    %v542 = vsel %vm537, %v534, 0
    %v545 = vsel %vm537, %v535, 0
    %v548 = vsel %vm537, %v536, 0
    %550 = vmatpush.xpose.msra.mxu0 0.0
    %551 = vmatpush.xpose.msra.mxu0 0.0
    %552 = vmatpush.xpose.msra.mxu0 0.0
    %553 = vmatpush.xpose.msra.mxu0 0.0
    %554 = vmatpush.xpose.msra.mxu0 0.0
    %555 = vmatpush.xpose.msra.mxu0 0.0
    %556 = vmatpush.xpose.msra.mxu0 0.0
    %557 = vmatpush.xpose.msra.mxu0 0.0
    %558 = vmatpush.xpose.msra.mxu0 0.0
    %559 = vmatpush.xpose.msra.mxu0 0.0
    %560 = vmatpush.xpose.msra.mxu0 0.0
    %561 = vmatpush.xpose.msra.mxu0 0.0
    %562 = vmatpush.xpose.msra.mxu0 %v548
    %563 = vmatpush.xpose.msra.mxu0 %v545
    %564 = vmatpush.xpose.msra.mxu0 %v542
    %565 = vmatpush.xpose.msra.mxu0 %v539
    %566 = vmatmul.f32.gmra.mxu0 %v539
    %v567 = vpop.f32.mrf.mxu0
    %v568 = vadd.f32 0.0, %v567
    %569 = vmatmul.f32.gmra.mxu0 %v542
    %v570 = vpop.f32.mrf.mxu0
    %v571 = vadd.f32 0.0, %v570
    %572 = vmatmul.f32.gmra.mxu0 %v545
    %v573 = vpop.f32.mrf.mxu0
    %v574 = vadd.f32 0.0, %v573
    %575 = vmatmul.f32.gmra.mxu0 %v548
    %v576 = vpop.f32.mrf.mxu0
    %v577 = vadd.f32 0.0, %v576
    %578 = vdwg.mxu0
    %v579 = vmul.f32 %v533, %v533
    %v580 = vmul.f32 %v534, %v534
    %v581 = vmul.f32 %v535, %v535
    %v582 = vmul.f32 %v536, %v536
    %v583 = vsel %vm537, %v579, 0.0
    %584 = vadd.xlane.f32.xlu0 %v583
    %v585 = vpop.xlane.xlu0 %584
    %v586 = vsel %vm537, %v580, 0.0
    %587 = vadd.xlane.f32.xlu0 %v586
    %v588 = vpop.xlane.xlu0 %587
    %v589 = vsel %vm537, %v581, 0.0
    %590 = vadd.xlane.f32.xlu0 %v589
    %v591 = vpop.xlane.xlu0 %590
    %v592 = vsel %vm537, %v582, 0.0
    %593 = vadd.xlane.f32.xlu0 %v592
    %v594 = vpop.xlane.xlu0 %593
    %vm595 = vcmp.eq.s32.totalorder %v219, %v73
    %vm596 = vcmp.eq.s32.totalorder %v220, %v73
    %vm597 = vcmp.eq.s32.totalorder %v221, %v73
    %vm598 = vcmp.eq.s32.totalorder %v222, %v73
    %v599 = vsel %vm595, 1, 0
    %v600 = vsel %vm596, 1, 0
    %v601 = vsel %vm597, 1, 0
    %v602 = vsel %vm598, 1, 0
    %v603 = vcvt.s32.f32 %v599
    %v604 = vcvt.s32.f32 %v600
    %v605 = vcvt.s32.f32 %v601
    %v606 = vcvt.s32.f32 %v602
    %v607 = vmul.f32 %v568, %v603
    %v608 = vmul.f32 %v571, %v604
    %v609 = vmul.f32 %v574, %v605
    %v610 = vmul.f32 %v577, %v606
    %vm611 = vcmask 261120
    %v612 = vsel %vm611, %v607, 0.0
    %v613 = vsel %vm611, %v608, 0.0
    %v614 = vadd.f32 %v612, %v613
    %v615 = vsel %vm611, %v609, 0.0
    %v616 = vadd.f32 %v614, %v615
    %v617 = vsel %vm611, %v610, 0.0
    %v618 = vadd.f32 %v616, %v617
    %v619 = vrot.slane %v618, 4
    %v620 = vadd.f32 %v618, %v619
    %v621 = vrot.slane %v620, 2
    %v622 = vadd.f32 %v620, %v621
    %v623 = vrot.slane %v622, 1
    %v624 = vadd.f32 %v622, %v623
    %v625 = vadd.f32 %v585, %v624
    %v626 = vadd.f32 %v588, %v624
    %v627 = vadd.f32 %v591, %v624
    %v628 = vadd.f32 %v594, %v624
    %v629 = vmul.f32 %v568, 2.0
    %v630 = vmul.f32 %v571, 2.0
    %v631 = vmul.f32 %v574, 2.0
    %v632 = vmul.f32 %v577, 2.0
    %v633 = vsub.f32 %v625, %v629
    %v634 = vsub.f32 %v626, %v630
    %v635 = vsub.f32 %v627, %v631
    %v636 = vsub.f32 %v628, %v632
    %v637 = vmax.f32 %v633, 0.0
    %v638 = vmax.f32 %v634, 0.0
    %v639 = vmax.f32 %v635, 0.0
    %v640 = vmax.f32 %v636, 0.0
    %v641 = vsel %vm611, %v637, 0.0
    %v642 = vsel %vm611, %v638, 0.0
    %v643 = vadd.f32 %v641, %v642
    %v644 = vsel %vm611, %v639, 0.0
    %v645 = vadd.f32 %v643, %v644
    %v646 = vsel %vm611, %v640, 0.0
    %v647 = vadd.f32 %v645, %v646
    %648 = vadd.xlane.f32.xlu0 %v647
    %v649 = vpop.xlane.xlu0 %648
    %v650 = vrot.slane %v649, 4
    %v651 = vadd.f32 %v649, %v650
    %v652 = vrot.slane %v651, 2
    %v653 = vadd.f32 %v651, %v652
    %v654 = vrot.slane %v653, 1
    %v655 = vadd.f32 %v653, %v654
    %s656 = vtos %v655
    %v657 = vstv %s656
    %v658 = vmul.f32 %v657, 0.0010080645
    %v659 = vmul.f32 %v658, 0.25
    %v660 = vrcp.pop %v659
    %v661 = vmul.f32 %v659, %v660
    %v662 = vsub.f32 1.0, %v661
    %v663 = vmul.f32 %v660, %v662
    %v664 = vadd.f32 %v660, %v663
    %vm665 = vweird.f32 %v659
    %vm666 = vweird.f32 %v660
    %vm667 = vmor %vm665, %vm666
    %v668 = vsel %vm667, %v660, %v664
    %v669 = vand.u32 2147483647, %v659
    %vm670 = vcmp.eq.f32.partialorder %v669, 8.507059e+37
    %v671 = vand.u32 %v659, 2147483648
    %v672 = vor.u32 1.1754944e-38, %v671
    %v673 = vsel %vm670, %v672, %v668
    %v674 = vsub.f32 0.0, %v673
    %v675 = vmul.f32 %v637, %v674
    %v676 = vmul.f32 %v638, %v674
    %v677 = vmul.f32 %v639, %v674
    %v678 = vmul.f32 %v640, %v674
    %v679 = vmul.f32 %v675, 1.442695
    %v680 = vpow.pop %v679
    %v681 = vmul.f32 %v676, 1.442695
    %v682 = vpow.pop %v681
    %v683 = vmul.f32 %v677, 1.442695
    %v684 = vpow.pop %v683
    %v685 = vmul.f32 %v678, 1.442695
    %v686 = vpow.pop %v685
    %v687 = vadd.f32 %v680, 0.0
    %v688 = vadd.f32 %v682, 0.0
    %v689 = vadd.f32 %v684, 0.0
    %v690 = vadd.f32 %v686, 0.0
    %v691 = vmul.f32 %v675, 0.5
    %v692 = vmul.f32 %v676, 0.5
    %v693 = vmul.f32 %v677, 0.5
    %v694 = vmul.f32 %v678, 0.5
    %v695 = vmul.f32 %v691, 1.442695
    %v696 = vpow.pop %v695
    %v697 = vmul.f32 %v692, 1.442695
    %v698 = vpow.pop %v697
    %v699 = vmul.f32 %v693, 1.442695
    %v700 = vpow.pop %v699
    %v701 = vmul.f32 %v694, 1.442695
    %v702 = vpow.pop %v701
    %v703 = vadd.f32 %v687, %v696
    %v704 = vadd.f32 %v688, %v698
    %v705 = vadd.f32 %v689, %v700
    %v706 = vadd.f32 %v690, %v702
    %v707 = vmul.f32 %v675, 0.25
    %v708 = vmul.f32 %v676, 0.25
    %v709 = vmul.f32 %v677, 0.25
    %v710 = vmul.f32 %v678, 0.25
    %v711 = vmul.f32 %v707, 1.442695
    %v712 = vpow.pop %v711
    %v713 = vmul.f32 %v708, 1.442695
    %v714 = vpow.pop %v713
    %v715 = vmul.f32 %v709, 1.442695
    %v716 = vpow.pop %v715
    %v717 = vmul.f32 %v710, 1.442695
    %v718 = vpow.pop %v717
    %v719 = vadd.f32 %v703, %v712
    %v720 = vadd.f32 %v704, %v714
    %v721 = vadd.f32 %v705, %v716
    %v722 = vadd.f32 %v706, %v718
    %v723 = vmul.f32 %v675, 0.125
    %v724 = vmul.f32 %v676, 0.125
    %v725 = vmul.f32 %v677, 0.125
    %v726 = vmul.f32 %v678, 0.125
    %v727 = vmul.f32 %v723, 1.442695
    %v728 = vpow.pop %v727
    %v729 = vmul.f32 %v724, 1.442695
    %v730 = vpow.pop %v729
    %v731 = vmul.f32 %v725, 1.442695
    %v732 = vpow.pop %v731
    %v733 = vmul.f32 %v726, 1.442695
    %v734 = vpow.pop %v733
    %v735 = vadd.f32 %v719, %v728
    %v736 = vadd.f32 %v720, %v730
    %v737 = vadd.f32 %v721, %v732
    %v738 = vadd.f32 %v722, %v734
    %v739 = vmul.f32 %v675, 0.0625
    %v740 = vmul.f32 %v676, 0.0625
    %v741 = vmul.f32 %v677, 0.0625
    %v742 = vmul.f32 %v678, 0.0625
    %v743 = vmul.f32 %v739, 1.442695
    %v744 = vpow.pop %v743
    %v745 = vmul.f32 %v740, 1.442695
    %v746 = vpow.pop %v745
    %v747 = vmul.f32 %v741, 1.442695
    %v748 = vpow.pop %v747
    %v749 = vmul.f32 %v742, 1.442695
    %v750 = vpow.pop %v749
    %v751 = vadd.f32 %v735, %v744
    %v752 = vadd.f32 %v736, %v746
    %v753 = vadd.f32 %v737, %v748
    %v754 = vadd.f32 %v738, %v750
    %vm755 = vcmp.lt.s32.totalorder %v219, 16
    %vm756 = vcmp.lt.s32.totalorder %v220, 16
    %vm757 = vcmp.lt.s32.totalorder %v221, 16
    %vm758 = vcmp.lt.s32.totalorder %v222, 16
    %v759 = vsel %vm755, 1.0, -1.0
    %v760 = vsel %vm756, 1.0, -1.0
    %v761 = vsel %vm757, 1.0, -1.0
    %v762 = vsel %vm758, 1.0, -1.0
    %vm763 = vcmp.lt.s32.totalorder %v73, 16
    %v764 = vsel %vm763, 1.0, -1.0
    %v765 = vmul.f32 %v759, %v764
    %v766 = vmul.f32 %v760, %v764
    %v767 = vmul.f32 %v761, %v764
    %v768 = vmul.f32 %v762, %v764
    %v769 = vmul.f32 %v765, %v751
    %v770 = vmul.f32 %v766, %v752
    %v771 = vmul.f32 %v767, %v753
    %v772 = vmul.f32 %v768, %v754
    %v773 = vsel %vm611, %v769, 0.0
    %v774 = vsel %vm611, %v770, 0.0
    %v775 = vadd.f32 %v773, %v774
    %v776 = vsel %vm611, %v771, 0.0
    %v777 = vadd.f32 %v775, %v776
    %v778 = vsel %vm611, %v772, 0.0
    %v779 = vadd.f32 %v777, %v778
    %780 = vadd.xlane.f32.xlu0 %v779
    %v781 = vpop.xlane.xlu0 %780
    %v782 = vrot.slane %v781, 4
    %v783 = vadd.f32 %v781, %v782
    %v784 = vrot.slane %v783, 2
    %v785 = vadd.f32 %v783, %v784
    %v786 = vrot.slane %v785, 1
    %v787 = vadd.f32 %v785, %v786
    %s788 = vtos %v787
    %v789 = vstv %s788
    %v790 = vmul.f32 %v789, 0.00390625
    %v791 = vadd.f32 %v193, %v207
    %v792 = vmul.f32 %v483, 0.1
    %v793 = vadd.f32 %v791, %v792
    %v794 = vmul.f32 %v532, 0.0001
    %v795 = vadd.f32 %v793, %v794
    %v796 = vmul.f32 %v790, 0.1
    %v797 = vadd.f32 %v795, %v796
    %s798 = vtos %v797
    %s799 = scalar_lea.smem [#allocation8], 0
    %800 = sst [smem:[%s799]] %s798
    // Predicated region
    $region38: #{tpu_custom_call.1} parent=1 // pred_check
      _
    $region39: #{tpu_custom_call.1} parent=1 // pred_check_branch
      %802 = sbr.rel (0) target = $region41
    $region40: #{tpu_custom_call.1} parent=1 // pred_region
      %804 = vsyncadd [#allocation4], 0
      %s806 = sshll.u32 %s6, 4
      %s807 = int_to_ptr.hbm [resolvable:$true] %s806
      %809 = dma.smem_to_hbm [#allocation8], 16, %s807, [#allocation4]
    $region41: #{tpu_custom_call.1} parent=1 // pred_fallthru
      _
    // Predicated region
    $region42: #{tpu_custom_call.1} parent=1 // pred_check
      _
    $region43: #{tpu_custom_call.1} parent=1 // pred_check_branch
      %811 = sbr.rel (0) target = $region45
    $region44: #{tpu_custom_call.1} parent=1 // pred_region
      %813 = dma.done [#allocation4], 16
    $region45: #{tpu_custom_call.1} parent=1 // pred_fallthru
      _
    %814 = sfence
    %815 = vsyncpa [#allocation3], 1
    %816 = vsyncpa [#allocation6], 1
    %817 = vsyncpa [#allocation4], 1

</llo_original>
